<compile_context>
chip_gen: v7x
topology: tpu7x:2x2x1
jax: 0.10.0
libtpu: 0.0.40
codegen_flags: <defaults>
</compile_context>

<pallas_src>
import jax
import jax.numpy as jnp
from jax.experimental import pallas as pl
from jax.experimental.pallas import tpu as pltpu


# ----------------------------------------------------------------------------
# One-time preparation (init): fold BN, build interpolation / banded conv
# matrices.  Nothing here runs in the per-step forward pass.
# ----------------------------------------------------------------------------
def fold_bn(conv_bias, gamma, beta, running_mean, running_var, eps=1e-5):
    scale = gamma / jnp.sqrt(running_var + eps)
    bias = (conv_bias - running_mean) * scale + beta
    return scale, bias


def _interp_matrix(out_size, in_size):
    """L (out_size, in_size) s.t. L @ v == bilinear align_corners=True resampling
    of v along one axis (matches torch.nn.functional.interpolate)."""
    if in_size == 1:
        return jnp.ones((out_size, 1), jnp.float32)
    if out_size == 1:
        return jnp.zeros((1, in_size), jnp.float32).at[0, 0].set(1.0)
    src = jnp.arange(out_size, dtype=jnp.float32) * ((in_size - 1) / (out_size - 1))
    i0 = jnp.clip(jnp.floor(src).astype(jnp.int32), 0, in_size - 2)
    frac = src - i0.astype(jnp.float32)
    return (jax.nn.one_hot(i0, in_size, dtype=jnp.float32) * (1.0 - frac)[:, None]
            + jax.nn.one_hot(i0 + 1, in_size, dtype=jnp.float32) * frac[:, None])


def _banded_conv_matrix_fused(w_hwio, scale, width, row_perm=None):
    """3x3 'same' conv along W (BN scale folded in) as ONE fused-K matrix.

    Returns M of shape (3*width*Cin, width*Cout) such that, with the row-flat
    LHS  lhs = [z_prev | z_center | z_next]  (each (rows, width*Cin), lanes in
    (w, ci) order, z_prev/z_next = rows shifted by -1/+1 with zeros at image
    boundaries),  lhs @ M  is the conv output in row-flat (w, co) lane order.
    W-boundary zero padding is handled by band truncation (no lane halo needed).
    `row_perm` optionally permutes each dy-block's rows to a custom input lane
    layout (used for conv1's [x_up | skip] concat layout).
    """
    kh, kw, cin, cout = w_hwio.shape
    wf = (w_hwio * scale[None, None, None, :]).astype(jnp.float32)
    blocks = []
    for dy in range(kh):
        m = jnp.zeros((width * cin, width * cout), jnp.float32)
        for dx in range(kw):
            # nonzero at [w_in, w_out] with w_out = w_in + 1 - dx (truncated at edges)
            band = jnp.eye(width, width, k=1 - dx, dtype=jnp.float32)
            m = m + jnp.kron(band, wf[dy, dx])
        if row_perm is not None:
            m = m[row_perm, :]
        blocks.append(m)
    return jnp.concatenate(blocks, axis=0)          # (3*width*Cin, width*Cout)


def prepare_upsample_block(params, x_shape, skip_shape, images_per_step=None, eps=1e-5):
    """Precompute everything the fused kernel needs.  Call once at init time."""
    n, hx, wx, cin = x_shape
    _, hs, ws, cskip = skip_shape
    c1 = cin + cskip
    cout = params["w1"].shape[-1]
    b = n if images_per_step is None else images_per_step
    assert n % b == 0, "images_per_step must divide the batch"

    s1, bias1 = fold_bn(params["b1"], params["g1"], params["be1"],
                        params["rm1"], params["rv1"], eps)
    s2, bias2 = fold_bn(params["b2"], params["g2"], params["be2"],
                        params["rm2"], params["rv2"], eps)

    ly = _interp_matrix(hs, hx)                                   # (Hs, Hx)
    lx = _interp_matrix(ws, wx)                                   # (Ws, Wx)
    # Block-diagonal H-upsample for B images stacked along sublanes.
    ly_blk = jnp.kron(jnp.eye(b, dtype=jnp.float32), ly)          # (B*Hs, B*Hx)
    # W-upsample straight into the (w, ci) lane layout of the conv1 input.
    a = jnp.kron(lx.T, jnp.eye(cin, dtype=jnp.float32))           # (Wx*Cin, Ws*Cin)

    # conv1 input lane layout: [ x_up lanes (w, ci) | skip lanes (w, cs) ]
    # -> permute the naturally (w, c1)-ordered weight rows to match, so the
    #    channel-concat needs no scatter matmul at runtime.
    iu = jnp.arange(ws * cin)
    isk = jnp.arange(ws * cskip)
    perm1 = jnp.concatenate([
        (iu // cin) * c1 + (iu % cin),                # x_up channels [0, cin)
        (isk // cskip) * c1 + cin + (isk % cskip),    # skip channels [cin, c1)
    ])

    return {
        "ly": ly_blk,
        "a": a,
        "m1": _banded_conv_matrix_fused(params["w1"], s1, ws, row_perm=perm1),
        "b1": jnp.tile(bias1, ws).reshape(1, ws * cout).astype(jnp.float32),
        "m2": _banded_conv_matrix_fused(params["w2"], s2, ws),
        "b2": jnp.tile(bias2, ws).reshape(1, ws * cout).astype(jnp.float32),
    }


# ----------------------------------------------------------------------------
# Fused forward: one pallas_call, whole batch per grid step.
# ----------------------------------------------------------------------------
@jax.jit
def upsample_block_forward(x_nhwc, skip_nhwc, prep):
    """x: (N, Hx, Wx, Cin), skip: (N, Hs, Ws, Cskip) -> (N, Hs, Ws, Cout)."""
    n, hx, wx, cin = x_nhwc.shape
    _, hs, ws, cskip = skip_nhwc.shape
    c1 = cin + cskip
    cout = prep["b1"].shape[1] // ws
    b = prep["ly"].shape[0] // hs                   # images per grid step
    assert n % b == 0
    n_steps = n // b
    m_rows = b * hs                                  # matmul M for this step

    x2d = x_nhwc.reshape(n * hx, wx * cin)           # row-flat, free reshapes
    skip2d = skip_nhwc.reshape(n * hs, ws * cskip)

    def kernel(x_ref, skip_ref, ly_ref, a_ref, m1_ref, b1_ref, m2_ref, b2_ref,
               o_ref, zpad1_ref, zpad2_ref):
        f32 = jnp.float32

        # Bilinear upsample (align_corners=True) = two matmuls (W, then block-
        # diagonal H over the stacked images).
        xw = jnp.dot(x_ref[...].astype(f32), a_ref[...],
                     preferred_element_type=f32)                    # (B*Hx, Ws*Cin)
        up = jnp.dot(ly_ref[...], xw, preferred_element_type=f32)   # (M, Ws*Cin)

        # Channel concat(x_up, skip) = two disjoint lane-range stores into the
        # conv1 input slab (interior at rows 1..M; rows 0 / M+1 are the H halo).
        zpad1_ref[1:m_rows + 1, 0:ws * cin] = up
        zpad1_ref[1:m_rows + 1, ws * cin:ws * c1] = skip_ref[...].astype(f32)

        # Row predicates that drop the +-1-row neighbour across image boundaries
        # in the sublane-stacked batch (also discards the never-written halo
        # rows, so the slabs need no zero-initialisation at all).
        rows = jax.lax.broadcasted_iota(jnp.int32, (m_rows, 1), 0) % hs
        is_first = rows == 0
        is_last = rows == hs - 1

        def conv_bn_relu(zpad_ref, center, m_ref, b_ref):
            prev = jnp.where(is_first, 0.0, zpad_ref[0:m_rows, :])
            nxt = jnp.where(is_last, 0.0, zpad_ref[2:m_rows + 2, :])
            # Fused-K im2col: three 128-lane-aligned pieces -> one MXU push.
            lhs = jnp.concatenate([prev, center, nxt], axis=1)      # (M, 3*K)
            y = jnp.dot(lhs, m_ref[...], preferred_element_type=f32)
            return jnp.maximum(y + b_ref[...], 0.0)

        y1 = conv_bn_relu(zpad1_ref, zpad1_ref[1:m_rows + 1, :], m1_ref, b1_ref)
        zpad2_ref[1:m_rows + 1, :] = y1                             # stays in VMEM
        y2 = conv_bn_relu(zpad2_ref, y1, m2_ref, b2_ref)
        o_ref[...] = y2.astype(o_ref.dtype)                         # full-lane store

    # Advisory cost hint so XLA can overlap/schedule around this small call.
    flops = 2 * n_steps * (
        (b * hx) * (wx * cin) * (ws * cin)
        + m_rows * (b * hx) * (ws * cin)
        + m_rows * (3 * ws * c1) * (ws * cout)
        + m_rows * (3 * ws * cout) * (ws * cout))
    bytes_accessed = 4 * (x2d.size + skip2d.size + n * hs * ws * cout
                          + sum(int(prep[k].size)
                                for k in ("ly", "a", "m1", "b1", "m2", "b2")))

    out2d = pl.pallas_call(
        kernel,
        out_shape=jax.ShapeDtypeStruct((n * hs, ws * cout), x_nhwc.dtype),
        grid=(n_steps,),
        in_specs=[
            pl.BlockSpec((b * hx, wx * cin), lambda i: (i, 0)),
            pl.BlockSpec((b * hs, ws * cskip), lambda i: (i, 0)),
            pl.BlockSpec((b * hs, b * hx), lambda i: (0, 0)),
            pl.BlockSpec((wx * cin, ws * cin), lambda i: (0, 0)),
            pl.BlockSpec((3 * ws * c1, ws * cout), lambda i: (0, 0)),
            pl.BlockSpec((1, ws * cout), lambda i: (0, 0)),
            pl.BlockSpec((3 * ws * cout, ws * cout), lambda i: (0, 0)),
            pl.BlockSpec((1, ws * cout), lambda i: (0, 0)),
        ],
        out_specs=pl.BlockSpec((b * hs, ws * cout), lambda i: (i, 0)),
        scratch_shapes=[
            pltpu.VMEM((m_rows + 2, ws * c1), jnp.float32),    # conv1 input slab (+H halo)
            pltpu.VMEM((m_rows + 2, ws * cout), jnp.float32),  # conv2 input slab (+H halo)
        ],
        compiler_params=pltpu.CompilerParams(dimension_semantics=("parallel",)),
        cost_estimate=pl.CostEstimate(flops=int(flops), transcendentals=0,
                                      bytes_accessed=int(bytes_accessed)),
    )(x2d, skip2d, prep["ly"], prep["a"], prep["m1"], prep["b1"],
      prep["m2"], prep["b2"])

    return out2d.reshape(n, hs, ws, cout)


# ----------------------------------------------------------------------------
# Pure-JAX reference (independent path: gather-based upsample + XLA conv)
# ----------------------------------------------------------------------------
def bilinear_upsample_align_corners(x, out_h, out_w):
    N, H, W, C = x.shape

    def coords(out_size, in_size):
        if out_size == 1:
            return jnp.zeros((1,), jnp.float32)
        return jnp.arange(out_size, dtype=jnp.float32) * ((in_size - 1) / (out_size - 1))

    ys = coords(out_h, H)
    xs = coords(out_w, W)
    y0 = jnp.clip(jnp.floor(ys).astype(jnp.int32), 0, max(H - 2, 0))
    y1 = jnp.minimum(y0 + 1, H - 1)
    x0 = jnp.clip(jnp.floor(xs).astype(jnp.int32), 0, max(W - 2, 0))
    x1 = jnp.minimum(x0 + 1, W - 1)
    wy = (ys - y0.astype(jnp.float32))[None, :, None, None]
    wx = (xs - x0.astype(jnp.float32))[None, None, :, None]
    a = x[:, y0][:, :, x0]
    b = x[:, y0][:, :, x1]
    c = x[:, y1][:, :, x0]
    d = x[:, y1][:, :, x1]
    top = a * (1.0 - wx) + b * wx
    bot = c * (1.0 - wx) + d * wx
    return top * (1.0 - wy) + bot * wy


def _conv_bn_relu_ref(x_nhwc, w_hwio, scale, bias):
    y = jax.lax.conv_general_dilated(
        x_nhwc, w_hwio, window_strides=(1, 1), padding="SAME",
        dimension_numbers=("NHWC", "HWIO", "NHWC"))
    return jnp.maximum(y * scale[None, None, None, :] + bias[None, None, None, :], 0.0)


def upsample_block_reference(x, skip, params, eps=1e-5):
    _, hs, ws, _ = skip.shape
    x_up = bilinear_upsample_align_corners(x, hs, ws)
    cat = jnp.concatenate([x_up, skip], axis=-1)
    s1, b1 = fold_bn(params["b1"], params["g1"], params["be1"],
                     params["rm1"], params["rv1"], eps)
    y = _conv_bn_relu_ref(cat, params["w1"], s1, b1)
    s2, b2 = fold_bn(params["b2"], params["g2"], params["be2"],
                     params["rm2"], params["rv2"], eps)
    return _conv_bn_relu_ref(y, params["w2"], s2, b2)


# ----------------------------------------------------------------------------
# Main
# ----------------------------------------------------------------------------
if __name__ == "__main__":
    # Module config (small): in_channels=4, skip_channels=4, out_channels=8
    in_channels, skip_channels, out_channels = 4, 4, 8
    N, Hx, Wx = 2, 8, 8          # low-res feature
    Hs, Ws = 16, 16              # skip-connection spatial size

    key = jax.random.PRNGKey(0)
    keys = jax.random.split(key, 10)

    x = jax.random.normal(keys[0], (N, Hx, Wx, in_channels), jnp.float32)
    skip = jax.random.normal(keys[1], (N, Hs, Ws, skip_channels), jnp.float32)

    c1_in = in_channels + skip_channels
    params = {
        # conv1: PyTorch weight (Cout, Cin, 3, 3) -> HWIO (3, 3, Cin, Cout)
        "w1": 0.1 * jax.random.normal(keys[2], (3, 3, c1_in, out_channels), jnp.float32),
        "b1": 0.05 * jax.random.normal(keys[3], (out_channels,), jnp.float32),
        "g1": 1.0 + 0.1 * jax.random.normal(keys[4], (out_channels,), jnp.float32),
        "be1": 0.05 * jax.random.normal(keys[5], (out_channels,), jnp.float32),
        "rm1": jnp.zeros((out_channels,), jnp.float32),
        "rv1": jnp.ones((out_channels,), jnp.float32),
        # conv2
        "w2": 0.1 * jax.random.normal(keys[6], (3, 3, out_channels, out_channels), jnp.float32),
        "b2": 0.05 * jax.random.normal(keys[7], (out_channels,), jnp.float32),
        "g2": 1.0 + 0.1 * jax.random.normal(keys[8], (out_channels,), jnp.float32),
        "be2": 0.05 * jax.random.normal(keys[9], (out_channels,), jnp.float32),
        "rm2": jnp.zeros((out_channels,), jnp.float32),
        "rv2": jnp.ones((out_channels,), jnp.float32),
    }

    # One-time preparation (BN fold + interpolation / fused banded conv matrices).
    # Whole batch per grid step (images_per_step=None -> N); see v7x TODO above.
    prep = prepare_upsample_block(params, x.shape, skip.shape)
    prep = jax.tree_util.tree_map(jax.block_until_ready, prep)

    out = upsample_block_forward(x, skip, prep)
    out = jax.block_until_ready(out)
    assert out.shape == (N, Hs, Ws, out_channels), out.shape

    ref = jax.block_until_ready(upsample_block_reference(x, skip, params))
    err = float(jnp.max(jnp.abs(out - ref)))
    assert err < 1e-4, f"max abs error {err}"

    print("KERNEL_OK")
</pallas_src>

<mosaic_0001>
module attributes {stable_mosaic.version = 11 : i64} {
  func.func @kernel(%arg0: i32, %arg1: memref<16x32xf32, #tpu.memory_space<vmem>>, %arg2: memref<32x64xf32, #tpu.memory_space<vmem>>, %arg3: memref<32x16xf32, #tpu.memory_space<vmem>>, %arg4: memref<32x64xf32, #tpu.memory_space<vmem>>, %arg5: memref<384x128xf32, #tpu.memory_space<vmem>>, %arg6: memref<1x128xf32, #tpu.memory_space<vmem>>, %arg7: memref<384x128xf32, #tpu.memory_space<vmem>>, %arg8: memref<1x128xf32, #tpu.memory_space<vmem>>, %arg9: memref<32x128xf32, #tpu.memory_space<vmem>>, %arg10: memref<34x128xf32, #tpu.memory_space<vmem>>, %arg11: memref<34x128xf32, #tpu.memory_space<vmem>>) attributes {dimension_semantics = [#tpu.dimension_semantics<parallel>], iteration_bounds = array<i64: 1>, scalar_prefetch = 0 : i64, scratch_operands = 2 : i64, tpu.core_type = #tpu.core_type<tc>, window_params = [{transform_indices = @transform_0, window_bounds = array<i64: 16, 32>}, {transform_indices = @transform_1, window_bounds = array<i64: 32, 64>}, {pipeline_mode = #tpu.pipeline_mode<synchronous>, transform_indices = @transform_2, window_bounds = array<i64: 32, 16>}, {pipeline_mode = #tpu.pipeline_mode<synchronous>, transform_indices = @transform_3, window_bounds = array<i64: 32, 64>}, {pipeline_mode = #tpu.pipeline_mode<synchronous>, transform_indices = @transform_4, window_bounds = array<i64: 384, 128>}, {pipeline_mode = #tpu.pipeline_mode<synchronous>, transform_indices = @transform_5, window_bounds = array<i64: 1, 128>}, {pipeline_mode = #tpu.pipeline_mode<synchronous>, transform_indices = @transform_6, window_bounds = array<i64: 384, 128>}, {pipeline_mode = #tpu.pipeline_mode<synchronous>, transform_indices = @transform_7, window_bounds = array<i64: 1, 128>}, {transform_indices = @transform_8, window_bounds = array<i64: 32, 128>}]} {
    %c0 = arith.constant 0 : index
    %c0_0 = arith.constant 0 : index
    %0 = vector.load %arg1[%c0, %c0_0] : memref<16x32xf32, #tpu.memory_space<vmem>>, vector<16x32xf32>
    %c0_1 = arith.constant 0 : index
    %c0_2 = arith.constant 0 : index
    %1 = vector.load %arg4[%c0_1, %c0_2] : memref<32x64xf32, #tpu.memory_space<vmem>>, vector<32x64xf32>
    %cst = arith.constant dense<0.000000e+00> : vector<16x64xf32>
    %2 = tpu.matmul %0, %1, %cst {dimension_numbers = #tpu.dot_dimension_numbers<[1], [0], [0], [1], [0, 0, 1, 1], [], []>} : vector<16x32xf32>, vector<32x64xf32>, vector<16x64xf32> -> vector<16x64xf32>
    %c0_3 = arith.constant 0 : index
    %c0_4 = arith.constant 0 : index
    %3 = vector.load %arg3[%c0_3, %c0_4] : memref<32x16xf32, #tpu.memory_space<vmem>>, vector<32x16xf32>
    %cst_5 = arith.constant dense<0.000000e+00> : vector<32x64xf32>
    %4 = tpu.matmul %3, %2, %cst_5 {dimension_numbers = #tpu.dot_dimension_numbers<[1], [0], [0], [1], [0, 0, 1, 1], [], []>} : vector<32x16xf32>, vector<16x64xf32>, vector<32x64xf32> -> vector<32x64xf32>
    %c1 = arith.constant 1 : index
    %c0_6 = arith.constant 0 : index
    %5 = vector.load %arg10[%c1, %c0_6] : memref<34x128xf32, #tpu.memory_space<vmem>>, vector<32x64xf32>
    tpu.vector_store %arg10[%c1, %c0_6], %4 {strides = array<i32>} : memref<34x128xf32, #tpu.memory_space<vmem>>, vector<32x64xf32>,
    %c0_7 = arith.constant 0 : index
    %c0_8 = arith.constant 0 : index
    %6 = vector.load %arg2[%c0_7, %c0_8] : memref<32x64xf32, #tpu.memory_space<vmem>>, vector<32x64xf32>
    %c1_9 = arith.constant 1 : index
    %c64 = arith.constant 64 : index
    %7 = vector.load %arg10[%c1_9, %c64] : memref<34x128xf32, #tpu.memory_space<vmem>>, vector<32x64xf32>
    tpu.vector_store %arg10[%c1_9, %c64], %6 {strides = array<i32>} : memref<34x128xf32, #tpu.memory_space<vmem>>, vector<32x64xf32>,
    %8 = tpu.iota {dimensions = array<i32: 0>} : vector<32x1xi32>
    %c16_i32 = arith.constant 16 : i32
    %c0_i32 = arith.constant 0 : i32
    %9 = arith.cmpi eq, %c16_i32, %c0_i32 : i32
    %c1_i32 = arith.constant 1 : i32
    %10 = arith.select %9, %c1_i32, %c16_i32 : i32
    %11 = vector.broadcast %10 : i32 to vector<32x1xi32>
    %12 = arith.remsi %8, %11 : vector<32x1xi32>
    %c0_i32_10 = arith.constant 0 : i32
    %13 = vector.broadcast %c0_i32_10 : i32 to vector<32x1xi32>
    %14 = arith.cmpi ne, %12, %13 : vector<32x1xi32>
    %c0_i32_11 = arith.constant 0 : i32
    %15 = vector.broadcast %c0_i32_11 : i32 to vector<32x1xi32>
    %16 = arith.cmpi slt, %12, %15 : vector<32x1xi32>
    %c0_i32_12 = arith.constant 0 : i32
    %17 = arith.cmpi slt, %10, %c0_i32_12 : i32
    %18 = vector.broadcast %17 : i1 to vector<32x1xi1>
    %19 = vector.broadcast %18 : vector<32x1xi1> to vector<32x1xi1>
    %20 = arith.xori %16, %19 : vector<32x1xi1>
    %21 = arith.andi %20, %14 : vector<32x1xi1>
    %22 = vector.broadcast %10 : i32 to vector<32x1xi32>
    %23 = arith.addi %12, %22 : vector<32x1xi32>
    %24 = arith.select %21, %23, %12 : vector<32x1xi1>, vector<32x1xi32>
    %c0_i32_13 = arith.constant 0 : i32
    %25 = vector.broadcast %c0_i32_13 : i32 to vector<32x1xi32>
    %26 = arith.cmpi eq, %24, %25 : vector<32x1xi32>
    %c15_i32 = arith.constant 15 : i32
    %27 = vector.broadcast %c15_i32 : i32 to vector<32x1xi32>
    %28 = arith.cmpi eq, %24, %27 : vector<32x1xi32>
    %c1_14 = arith.constant 1 : index
    %c0_15 = arith.constant 0 : index
    %29 = vector.load %arg10[%c1_14, %c0_15] : memref<34x128xf32, #tpu.memory_space<vmem>>, vector<32x128xf32>
    %c0_16 = arith.constant 0 : index
    %c0_17 = arith.constant 0 : index
    %30 = vector.load %arg10[%c0_16, %c0_17] : memref<34x128xf32, #tpu.memory_space<vmem>>, vector<32x128xf32>
    %cst_18 = arith.constant 0.000000e+00 : f32
    %31 = vector.shape_cast %26 : vector<32x1xi1> to vector<32x1xi1>
    %32 = vector.broadcast %31 : vector<32x1xi1> to vector<32x128xi1>
    %33 = vector.broadcast %cst_18 : f32 to vector<32x128xf32>
    %34 = arith.select %32, %33, %30 : vector<32x128xi1>, vector<32x128xf32>
    %c2 = arith.constant 2 : index
    %c0_19 = arith.constant 0 : index
    %35 = vector.load %arg10[%c2, %c0_19] : memref<34x128xf32, #tpu.memory_space<vmem>>, vector<32x128xf32>
    %cst_20 = arith.constant 0.000000e+00 : f32
    %36 = vector.shape_cast %28 : vector<32x1xi1> to vector<32x1xi1>
    %37 = vector.broadcast %36 : vector<32x1xi1> to vector<32x128xi1>
    %38 = vector.broadcast %cst_20 : f32 to vector<32x128xf32>
    %39 = arith.select %37, %38, %35 : vector<32x128xi1>, vector<32x128xf32>
    %40 = tpu.concatenate %34, %29, %39 in 1 : vector<32x128xf32>, vector<32x128xf32>, vector<32x128xf32> -> vector<32x384xf32>
    %c0_21 = arith.constant 0 : index
    %c0_22 = arith.constant 0 : index
    %41 = vector.load %arg5[%c0_21, %c0_22] : memref<384x128xf32, #tpu.memory_space<vmem>>, vector<384x128xf32>
    %cst_23 = arith.constant dense<0.000000e+00> : vector<32x128xf32>
    %42 = tpu.matmul %40, %41, %cst_23 {dimension_numbers = #tpu.dot_dimension_numbers<[1], [0], [0], [1], [0, 0, 1, 1], [], []>} : vector<32x384xf32>, vector<384x128xf32>, vector<32x128xf32> -> vector<32x128xf32>
    %c0_24 = arith.constant 0 : index
    %c0_25 = arith.constant 0 : index
    %43 = vector.load %arg6[%c0_24, %c0_25] : memref<1x128xf32, #tpu.memory_space<vmem>>, vector<1x128xf32>
    %44 = vector.broadcast %43 : vector<1x128xf32> to vector<32x128xf32>
    %45 = arith.addf %42, %44 : vector<32x128xf32>
    %cst_26 = arith.constant 0.000000e+00 : f32
    %46 = vector.broadcast %cst_26 : f32 to vector<32x128xf32>
    %47 = arith.maximumf %45, %46 : vector<32x128xf32>
    %c1_27 = arith.constant 1 : index
    %c0_28 = arith.constant 0 : index
    %48 = vector.load %arg11[%c1_27, %c0_28] : memref<34x128xf32, #tpu.memory_space<vmem>>, vector<32x128xf32>
    tpu.vector_store %arg11[%c1_27, %c0_28], %47 {strides = array<i32>} : memref<34x128xf32, #tpu.memory_space<vmem>>, vector<32x128xf32>,
    %c0_29 = arith.constant 0 : index
    %c0_30 = arith.constant 0 : index
    %49 = vector.load %arg11[%c0_29, %c0_30] : memref<34x128xf32, #tpu.memory_space<vmem>>, vector<32x128xf32>
    %cst_31 = arith.constant 0.000000e+00 : f32
    %50 = vector.shape_cast %26 : vector<32x1xi1> to vector<32x1xi1>
    %51 = vector.broadcast %50 : vector<32x1xi1> to vector<32x128xi1>
    %52 = vector.broadcast %cst_31 : f32 to vector<32x128xf32>
    %53 = arith.select %51, %52, %49 : vector<32x128xi1>, vector<32x128xf32>
    %c2_32 = arith.constant 2 : index
    %c0_33 = arith.constant 0 : index
    %54 = vector.load %arg11[%c2_32, %c0_33] : memref<34x128xf32, #tpu.memory_space<vmem>>, vector<32x128xf32>
    %cst_34 = arith.constant 0.000000e+00 : f32
    %55 = vector.shape_cast %28 : vector<32x1xi1> to vector<32x1xi1>
    %56 = vector.broadcast %55 : vector<32x1xi1> to vector<32x128xi1>
    %57 = vector.broadcast %cst_34 : f32 to vector<32x128xf32>
    %58 = arith.select %56, %57, %54 : vector<32x128xi1>, vector<32x128xf32>
    %59 = tpu.concatenate %53, %47, %58 in 1 : vector<32x128xf32>, vector<32x128xf32>, vector<32x128xf32> -> vector<32x384xf32>
    %c0_35 = arith.constant 0 : index
    %c0_36 = arith.constant 0 : index
    %60 = vector.load %arg7[%c0_35, %c0_36] : memref<384x128xf32, #tpu.memory_space<vmem>>, vector<384x128xf32>
    %cst_37 = arith.constant dense<0.000000e+00> : vector<32x128xf32>
    %61 = tpu.matmul %59, %60, %cst_37 {dimension_numbers = #tpu.dot_dimension_numbers<[1], [0], [0], [1], [0, 0, 1, 1], [], []>} : vector<32x384xf32>, vector<384x128xf32>, vector<32x128xf32> -> vector<32x128xf32>
    %c0_38 = arith.constant 0 : index
    %c0_39 = arith.constant 0 : index
    %62 = vector.load %arg8[%c0_38, %c0_39] : memref<1x128xf32, #tpu.memory_space<vmem>>, vector<1x128xf32>
    %63 = vector.broadcast %62 : vector<1x128xf32> to vector<32x128xf32>
    %64 = arith.addf %61, %63 : vector<32x128xf32>
    %cst_40 = arith.constant 0.000000e+00 : f32
    %65 = vector.broadcast %cst_40 : f32 to vector<32x128xf32>
    %66 = arith.maximumf %64, %65 : vector<32x128xf32>
    %c0_41 = arith.constant 0 : index
    %c0_42 = arith.constant 0 : index
    %67 = vector.load %arg9[%c0_41, %c0_42] : memref<32x128xf32, #tpu.memory_space<vmem>>, vector<32x128xf32>
    tpu.vector_store %arg9[%c0_41, %c0_42], %66 {strides = array<i32>} : memref<32x128xf32, #tpu.memory_space<vmem>>, vector<32x128xf32>,
    return
  }
  func.func @transform_0(%arg0: i32) -> (i32, i32) {
    %c0_i32 = arith.constant 0 : i32
    %c0_i32_0 = arith.constant 0 : i32
    return %arg0, %c0_i32 : i32, i32
  }
  func.func @transform_1(%arg0: i32) -> (i32, i32) {
    %c0_i32 = arith.constant 0 : i32
    %c0_i32_0 = arith.constant 0 : i32
    return %arg0, %c0_i32 : i32, i32
  }
  func.func @transform_2(%arg0: i32) -> (i32, i32) {
    %c0_i32 = arith.constant 0 : i32
    %c0_i32_0 = arith.constant 0 : i32
    %c0_i32_1 = arith.constant 0 : i32
    return %c0_i32, %c0_i32_0 : i32, i32
  }
  func.func @transform_3(%arg0: i32) -> (i32, i32) {
    %c0_i32 = arith.constant 0 : i32
    %c0_i32_0 = arith.constant 0 : i32
    %c0_i32_1 = arith.constant 0 : i32
    return %c0_i32, %c0_i32_0 : i32, i32
  }
  func.func @transform_4(%arg0: i32) -> (i32, i32) {
    %c0_i32 = arith.constant 0 : i32
    %c0_i32_0 = arith.constant 0 : i32
    %c0_i32_1 = arith.constant 0 : i32
    return %c0_i32, %c0_i32_0 : i32, i32
  }
  func.func @transform_5(%arg0: i32) -> (i32, i32) {
    %c0_i32 = arith.constant 0 : i32
    %c0_i32_0 = arith.constant 0 : i32
    %c0_i32_1 = arith.constant 0 : i32
    return %c0_i32, %c0_i32_0 : i32, i32
  }
  func.func @transform_6(%arg0: i32) -> (i32, i32) {
    %c0_i32 = arith.constant 0 : i32
    %c0_i32_0 = arith.constant 0 : i32
    %c0_i32_1 = arith.constant 0 : i32
    return %c0_i32, %c0_i32_0 : i32, i32
  }
  func.func @transform_7(%arg0: i32) -> (i32, i32) {
    %c0_i32 = arith.constant 0 : i32
    %c0_i32_0 = arith.constant 0 : i32
    %c0_i32_1 = arith.constant 0 : i32
    return %c0_i32, %c0_i32_0 : i32, i32
  }
  func.func @transform_8(%arg0: i32) -> (i32, i32) {
    %c0_i32 = arith.constant 0 : i32
    %c0_i32_0 = arith.constant 0 : i32
    return %arg0, %c0_i32 : i32, i32
  }
}

</mosaic_0001>

<llo_original>
// kernel: upsample_block_forward.1
$region0: #{upsample_block_forward.1}
  #allocation0 [shape = 'u32[]', space=smem, size = 0x4, offset = 0x4, fixed_abs, tag = 'smem constant byte address 0x4 - core index']
  #allocation1 [shape = 'u32[144,128]{1,0:T(1,128)}', space=vmem, size = 0x12000, scoped, tag = 'internal scratch']
  #allocation2 [shape = 'f32[34,128]{1,0:T(8,128)}', space=vmem, size = 0x5000, scoped, tag = 'scratch operand']
  #allocation3 [shape = 'f32[34,128]{1,0:T(8,128)}', space=vmem, size = 0x5000, scoped, tag = 'scratch operand']
  %s0 = inlined_call_operand.vmem [shape: f32[16,32], index: 0, kind: input, shape index: {}]
  %s1 = inlined_call_operand.vmem [shape: f32[32,64], index: 1, kind: input, shape index: {}]
  %s2 = inlined_call_operand.vmem [shape: f32[32,16], index: 2, kind: input, shape index: {}]
  %s3 = inlined_call_operand.vmem [shape: f32[32,64], index: 3, kind: input, shape index: {}]
  %s4 = inlined_call_operand.vmem [shape: f32[384,128], index: 4, kind: input, shape index: {}]
  %s5 = inlined_call_operand.vmem [shape: f32[1,128], index: 5, kind: input, shape index: {}]
  %s6 = inlined_call_operand.vmem [shape: f32[384,128], index: 6, kind: input, shape index: {}]
  %s7 = inlined_call_operand.vmem [shape: f32[1,128], index: 7, kind: input, shape index: {}]
  %s8 = inlined_call_operand.vmem [shape: f32[32,128], index: 8, kind: output, shape index: {}]
  %s9 = sld [smem:[#allocation0]]
  $region42: #{upsample_block_forward.1} parent=0
    _
  %s11 = ssub.s32 1, %s9
  %s12 = scalar_select 0, %s11, %s9
  // Predicated region
  $region2: #{upsample_block_forward.1} parent=0 // pred_check
    _
  $region3: #{upsample_block_forward.1} parent=0 // pred_check_branch
    %14 = sbr.rel (0) target = $region5
  $region4: #{upsample_block_forward.1} parent=0 // pred_region
    _
  $region5: #{upsample_block_forward.1} parent=0 // pred_fallthru
    _
  // Predicated region
  $region6: #{upsample_block_forward.1} parent=0 // pred_check
    _
  $region7: #{upsample_block_forward.1} parent=0 // pred_check_branch
    %16 = sbr.rel (0) target = $region9
  $region8: #{upsample_block_forward.1} parent=0 // pred_region
    _
  $region9: #{upsample_block_forward.1} parent=0 // pred_fallthru
    _
  // Predicated region
  $region10: #{upsample_block_forward.1} parent=0 // pred_check
    _
  $region11: #{upsample_block_forward.1} parent=0 // pred_check_branch
    %18 = sbr.rel (0) target = $region13
  $region12: #{upsample_block_forward.1} parent=0 // pred_region
    _
  $region13: #{upsample_block_forward.1} parent=0 // pred_fallthru
    _
  // Predicated region
  $region14: #{upsample_block_forward.1} parent=0 // pred_check
    _
  $region15: #{upsample_block_forward.1} parent=0 // pred_check_branch
    %20 = sbr.rel (0) target = $region17
  $region16: #{upsample_block_forward.1} parent=0 // pred_region
    _
  $region17: #{upsample_block_forward.1} parent=0 // pred_fallthru
    _
  // Predicated region
  $region18: #{upsample_block_forward.1} parent=0 // pred_check
    _
  $region19: #{upsample_block_forward.1} parent=0 // pred_check_branch
    %22 = sbr.rel (0) target = $region21
  $region20: #{upsample_block_forward.1} parent=0 // pred_region
    _
  $region21: #{upsample_block_forward.1} parent=0 // pred_fallthru
    _
  // Predicated region
  $region22: #{upsample_block_forward.1} parent=0 // pred_check
    _
  $region23: #{upsample_block_forward.1} parent=0 // pred_check_branch
    %24 = sbr.rel (0) target = $region25
  $region24: #{upsample_block_forward.1} parent=0 // pred_region
    _
  $region25: #{upsample_block_forward.1} parent=0 // pred_fallthru
    _
  // Predicated region
  $region26: #{upsample_block_forward.1} parent=0 // pred_check
    _
  $region27: #{upsample_block_forward.1} parent=0 // pred_check_branch
    %26 = sbr.rel (0) target = $region29
  $region28: #{upsample_block_forward.1} parent=0 // pred_region
    _
  $region29: #{upsample_block_forward.1} parent=0 // pred_fallthru
    _
  // Predicated region
  $region30: #{upsample_block_forward.1} parent=0 // pred_check
    _
  $region31: #{upsample_block_forward.1} parent=0 // pred_check_branch
    %28 = sbr.rel (0) target = $region33
  $region32: #{upsample_block_forward.1} parent=0 // pred_region
    _
  $region33: #{upsample_block_forward.1} parent=0 // pred_fallthru
    _
  %v29 = vld [vmem:[%s0] sm:$0xff]
  %v30 = vld [vmem:[%s0 + $0x8] sm:$0xff]
  %v31 = vld [vmem:[%s3] sm:$0xff]
  %v32 = vld [vmem:[%s3 + $0x8] sm:$0xff]
  %v33 = vld [vmem:[%s3 + $0x10] sm:$0xff]
  %v34 = vld [vmem:[%s3 + $0x18] sm:$0xff]
  %vm35 = vcmask 261120
  %v37 = vsel %vm35, %v29, 0
  %v40 = vsel %vm35, %v30, 0
  %42 = vmatprep.subr.mxu0 0.0
  %43 = vmatpush1.msra.mxu0 %v31
  %44 = vmatprep.subr.mxu0 0.0
  %45 = vmatpush1.msra.mxu0 %v32
  %46 = vmatprep.subr.mxu0 0.0
  %47 = vmatpush1.msra.mxu0 %v33
  %48 = vmatprep.subr.mxu0 0.0
  %49 = vmatpush1.msra.mxu0 %v34
  %50 = vmatprep.subr.mxu0 0.0
  %51 = vmatpush1.msra.mxu0 0.0
  %52 = vmatprep.subr.mxu0 0.0
  %53 = vmatpush1.msra.mxu0 0.0
  %54 = vmatprep.subr.mxu0 0.0
  %55 = vmatpush1.msra.mxu0 0.0
  %56 = vmatprep.subr.mxu0 0.0
  %57 = vmatpush1.msra.mxu0 0.0
  %58 = vmatprep.subr.mxu0 0.0
  %59 = vmatpush1.msra.mxu0 0.0
  %60 = vmatprep.subr.mxu0 0.0
  %61 = vmatpush1.msra.mxu0 0.0
  %62 = vmatprep.subr.mxu0 0.0
  %63 = vmatpush1.msra.mxu0 0.0
  %64 = vmatprep.subr.mxu0 0.0
  %65 = vmatpush1.msra.mxu0 0.0
  %66 = vmatprep.subr.mxu0 0.0
  %67 = vmatpush1.msra.mxu0 0.0
  %68 = vmatprep.subr.mxu0 0.0
  %69 = vmatpush1.msra.mxu0 0.0
  %70 = vmatprep.subr.mxu0 0.0
  %71 = vmatpush1.msra.mxu0 0.0
  %72 = vmatprep.subr.mxu0 0.0
  %73 = vmatpush1.msra.mxu0 0.0
  %74 = vmatprep.subr.mxu0 0.0
  %75 = vmatpush1.msra.mxu0 0.0
  %76 = vmatprep.subr.mxu0 0.0
  %77 = vmatpush1.msra.mxu0 0.0
  %78 = vmatprep.subr.mxu0 0.0
  %79 = vmatpush1.msra.mxu0 0.0
  %80 = vmatprep.subr.mxu0 0.0
  %81 = vmatpush1.msra.mxu0 0.0
  %82 = vmatprep.subr.mxu0 0.0
  %83 = vmatpush1.msra.mxu0 0.0
  %84 = vmatprep.subr.mxu0 0.0
  %85 = vmatpush1.msra.mxu0 0.0
  %86 = vmatprep.subr.mxu0 0.0
  %87 = vmatpush1.msra.mxu0 0.0
  %88 = vmatprep.subr.mxu0 0.0
  %89 = vmatpush1.msra.mxu0 0.0
  %90 = vmatprep.subr.mxu0 0.0
  %91 = vmatpush1.msra.mxu0 0.0
  %92 = vmatprep.subr.mxu0 0.0
  %93 = vmatpush1.msra.mxu0 0.0
  %94 = vmatprep.subr.mxu0 0.0
  %95 = vmatpush1.msra.mxu0 0.0
  %96 = vmatprep.subr.mxu0 0.0
  %97 = vmatpush1.msra.mxu0 0.0
  %98 = vmatprep.subr.mxu0 0.0
  %99 = vmatpush1.msra.mxu0 0.0
  %100 = vmatprep.subr.mxu0 0.0
  %101 = vmatpush1.msra.mxu0 0.0
  %102 = vmatprep.subr.mxu0 0.0
  %103 = vmatpush1.msra.mxu0 0.0
  %104 = vmatprep.subr.mxu0 0.0
  %105 = vmatpush1.msra.mxu0 0.0
  %106 = vmatprep.mubr.f32.mxu0 0.0
  %107 = vmatmul.mubr.f32.gmra.mrb[0].mxu0 %v37
  %v108 = vpop.f32.mrb[0].mxu0
  %v109 = vadd.f32 0.0, %v108
  %v110 = vpop.f32.mrb[0].mxu0
  %111 = vmatprep.mubr.f32.mxu0 0.0
  %112 = vmatmul.mubr.f32.gmra.mrb[0].mxu0 %v40
  %v113 = vpop.f32.mrb[0].mxu0
  %v114 = vadd.f32 0.0, %v113
  %v115 = vpop.f32.mrb[0].mxu0
  %116 = vdwg.mxu0
  %v117 = vld [vmem:[%s2] sm:$0xff]
  %v118 = vld [vmem:[%s2 + $0x8] sm:$0xff]
  %v119 = vld [vmem:[%s2 + $0x10] sm:$0xff]
  %v120 = vld [vmem:[%s2 + $0x18] sm:$0xff]
  %vm121 = vcmask 130048
  %v123 = vsel %vm121, %v117, 0
  %v126 = vsel %vm121, %v118, 0
  %v129 = vsel %vm121, %v119, 0
  %v132 = vsel %vm121, %v120, 0
  %134 = vmatprep.subr.mxu0 0.0
  %135 = vmatpush1.msra.mxu0 %v109
  %136 = vmatprep.subr.mxu0 0.0
  %137 = vmatpush1.msra.mxu0 %v114
  %138 = vmatprep.subr.mxu0 0.0
  %139 = vmatpush1.msra.mxu0 0.0
  %140 = vmatprep.subr.mxu0 0.0
  %141 = vmatpush1.msra.mxu0 0.0
  %142 = vmatprep.subr.mxu0 0.0
  %143 = vmatpush1.msra.mxu0 0.0
  %144 = vmatprep.subr.mxu0 0.0
  %145 = vmatpush1.msra.mxu0 0.0
  %146 = vmatprep.subr.mxu0 0.0
  %147 = vmatpush1.msra.mxu0 0.0
  %148 = vmatprep.subr.mxu0 0.0
  %149 = vmatpush1.msra.mxu0 0.0
  %150 = vmatprep.subr.mxu0 0.0
  %151 = vmatpush1.msra.mxu0 0.0
  %152 = vmatprep.subr.mxu0 0.0
  %153 = vmatpush1.msra.mxu0 0.0
  %154 = vmatprep.subr.mxu0 0.0
  %155 = vmatpush1.msra.mxu0 0.0
  %156 = vmatprep.subr.mxu0 0.0
  %157 = vmatpush1.msra.mxu0 0.0
  %158 = vmatprep.subr.mxu0 0.0
  %159 = vmatpush1.msra.mxu0 0.0
  %160 = vmatprep.subr.mxu0 0.0
  %161 = vmatpush1.msra.mxu0 0.0
  %162 = vmatprep.subr.mxu0 0.0
  %163 = vmatpush1.msra.mxu0 0.0
  %164 = vmatprep.subr.mxu0 0.0
  %165 = vmatpush1.msra.mxu0 0.0
  %166 = vmatprep.subr.mxu0 0.0
  %167 = vmatpush1.msra.mxu0 0.0
  %168 = vmatprep.subr.mxu0 0.0
  %169 = vmatpush1.msra.mxu0 0.0
  %170 = vmatprep.subr.mxu0 0.0
  %171 = vmatpush1.msra.mxu0 0.0
  %172 = vmatprep.subr.mxu0 0.0
  %173 = vmatpush1.msra.mxu0 0.0
  %174 = vmatprep.subr.mxu0 0.0
  %175 = vmatpush1.msra.mxu0 0.0
  %176 = vmatprep.subr.mxu0 0.0
  %177 = vmatpush1.msra.mxu0 0.0
  %178 = vmatprep.subr.mxu0 0.0
  %179 = vmatpush1.msra.mxu0 0.0
  %180 = vmatprep.subr.mxu0 0.0
  %181 = vmatpush1.msra.mxu0 0.0
  %182 = vmatprep.subr.mxu0 0.0
  %183 = vmatpush1.msra.mxu0 0.0
  %184 = vmatprep.subr.mxu0 0.0
  %185 = vmatpush1.msra.mxu0 0.0
  %186 = vmatprep.subr.mxu0 0.0
  %187 = vmatpush1.msra.mxu0 0.0
  %188 = vmatprep.subr.mxu0 0.0
  %189 = vmatpush1.msra.mxu0 0.0
  %190 = vmatprep.subr.mxu0 0.0
  %191 = vmatpush1.msra.mxu0 0.0
  %192 = vmatprep.subr.mxu0 0.0
  %193 = vmatpush1.msra.mxu0 0.0
  %194 = vmatprep.subr.mxu0 0.0
  %195 = vmatpush1.msra.mxu0 0.0
  %196 = vmatprep.subr.mxu0 0.0
  %197 = vmatpush1.msra.mxu0 0.0
  %198 = vmatprep.mubr.f32.mxu0 0.0
  %199 = vmatmul.mubr.f32.gmra.mrb[0].mxu0 %v123
  %v200 = vpop.f32.mrb[0].mxu0
  %v201 = vadd.f32 0.0, %v200
  %v202 = vpop.f32.mrb[0].mxu0
  %203 = vmatprep.mubr.f32.mxu0 0.0
  %204 = vmatmul.mubr.f32.gmra.mrb[0].mxu0 %v126
  %v205 = vpop.f32.mrb[0].mxu0
  %v206 = vadd.f32 0.0, %v205
  %v207 = vpop.f32.mrb[0].mxu0
  %208 = vmatprep.mubr.f32.mxu0 0.0
  %209 = vmatmul.mubr.f32.gmra.mrb[0].mxu0 %v129
  %v210 = vpop.f32.mrb[0].mxu0
  %v211 = vadd.f32 0.0, %v210
  %v212 = vpop.f32.mrb[0].mxu0
  %213 = vmatprep.mubr.f32.mxu0 0.0
  %214 = vmatmul.mubr.f32.gmra.mrb[0].mxu0 %v132
  %v215 = vpop.f32.mrb[0].mxu0
  %v216 = vadd.f32 0.0, %v215
  %v217 = vpop.f32.mrb[0].mxu0
  %218 = vdwg.mxu0
  %vm219 = vcmask 523264
  %220 = vst.msk [vmem:[#allocation2 + $0x1] sm:$0xff] %vm219, %v201
  %221 = vst.msk [vmem:[#allocation2 + $0x9] sm:$0xff] %vm219, %v206
  %222 = vst.msk [vmem:[#allocation2 + $0x11] sm:$0xff] %vm219, %v211
  %223 = vst.msk [vmem:[#allocation2 + $0x19] sm:$0xff] %vm219, %v216
  %v224 = vld [vmem:[%s1] sm:$0xff]
  %v225 = vld [vmem:[%s1 + $0x8] sm:$0xff]
  %v226 = vld [vmem:[%s1 + $0x10] sm:$0xff]
  %v227 = vld [vmem:[%s1 + $0x18] sm:$0xff]
  %232 = vrot.lane.b32.xlu0 %v224, 64
  %v233 = vpop.permute.xlu0 %232
  %234 = vrot.lane.b32.xlu0 %v225, 64
  %v235 = vpop.permute.xlu0 %234
  %236 = vrot.lane.b32.xlu0 %v226, 64
  %v237 = vpop.permute.xlu0 %236
  %238 = vrot.lane.b32.xlu0 %v227, 64
  %v239 = vpop.permute.xlu0 %238
  %vm244 = vcmask 1048064
  %245 = vst.msk [vmem:[#allocation2 + $0x1] sm:$0xff] %vm244, %v233
  %246 = vst.msk [vmem:[#allocation2 + $0x9] sm:$0xff] %vm244, %v235
  %247 = vst.msk [vmem:[#allocation2 + $0x11] sm:$0xff] %vm244, %v237
  %248 = vst.msk [vmem:[#allocation2 + $0x19] sm:$0xff] %vm244, %v239
  %v249 = vlaneseq
  %v250 = vshrl.u32 %v249, 7
  %v251 = vadd.s32 %v250, 8
  %v252 = vadd.s32 %v250, 16
  %v253 = vadd.s32 %v250, 24
  %vm254 = vcmp.lt.s32.totalorder %v250, 0
  %v255 = vsub.s32 0, %v250
  %v256 = vsel %vm254, %v255, %v250
  %v257 = vshrl.u32 %v256, 4
  %v258 = vand.u32 %v256, 15
  %v259 = vsub.s32 0, %v258
  %v260 = vsel %vm254, %v259, %v258
  %vm261 = vcmp.lt.s32.totalorder %v251, 0
  %v262 = vsub.s32 0, %v251
  %v263 = vsel %vm261, %v262, %v251
  %v264 = vshrl.u32 %v263, 4
  %v265 = vand.u32 %v263, 15
  %v266 = vsub.s32 0, %v265
  %v267 = vsel %vm261, %v266, %v265
  %vm268 = vcmp.lt.s32.totalorder %v252, 0
  %v269 = vsub.s32 0, %v252
  %v270 = vsel %vm268, %v269, %v252
  %v271 = vshrl.u32 %v270, 4
  %v272 = vand.u32 %v270, 15
  %v273 = vsub.s32 0, %v272
  %v274 = vsel %vm268, %v273, %v272
  %vm275 = vcmp.lt.s32.totalorder %v253, 0
  %v276 = vsub.s32 0, %v253
  %v277 = vsel %vm275, %v276, %v253
  %v278 = vshrl.u32 %v277, 4
  %v279 = vand.u32 %v277, 15
  %v280 = vsub.s32 0, %v279
  %v281 = vsel %vm275, %v280, %v279
  %vm282 = vcmp.ne.s32.totalorder %v260, 0
  %vm283 = vcmp.ne.s32.totalorder %v267, 0
  %vm284 = vcmp.ne.s32.totalorder %v274, 0
  %vm285 = vcmp.ne.s32.totalorder %v281, 0
  %vm286 = vcmp.lt.s32.totalorder %v260, 0
  %vm287 = vcmp.lt.s32.totalorder %v267, 0
  %vm288 = vcmp.lt.s32.totalorder %v274, 0
  %vm289 = vcmp.lt.s32.totalorder %v281, 0
  %vm290 = vmand %vm286, %vm282
  %vm291 = vmand %vm287, %vm283
  %vm292 = vmand %vm288, %vm284
  %vm293 = vmand %vm289, %vm285
  %v294 = vadd.s32 %v260, 16
  %v295 = vadd.s32 %v267, 16
  %v296 = vadd.s32 %v274, 16
  %v297 = vadd.s32 %v281, 16
  %v298 = vsel %vm290, %v294, %v260
  %v299 = vsel %vm291, %v295, %v267
  %v300 = vsel %vm292, %v296, %v274
  %v301 = vsel %vm293, %v297, %v281
  %vm302 = vcmp.eq.s32.totalorder %v298, 0
  %vm303 = vcmp.eq.s32.totalorder %v299, 0
  %vm304 = vcmp.eq.s32.totalorder %v300, 0
  %vm305 = vcmp.eq.s32.totalorder %v301, 0
  %vm306 = vcmp.eq.s32.totalorder %v298, 15
  %vm307 = vcmp.eq.s32.totalorder %v299, 15
  %vm308 = vcmp.eq.s32.totalorder %v300, 15
  %vm309 = vcmp.eq.s32.totalorder %v301, 15
  %v310 = vld [vmem:[#allocation2 + $0x1] sm:$0xff]
  %v311 = vld [vmem:[#allocation2 + $0x9] sm:$0xff]
  %v312 = vld [vmem:[#allocation2 + $0x11] sm:$0xff]
  %v313 = vld [vmem:[#allocation2 + $0x19] sm:$0xff]
  %v314 = vld [vmem:[#allocation2] sm:$0xff]
  %v315 = vld [vmem:[#allocation2 + $0x8] sm:$0xff]
  %v316 = vld [vmem:[#allocation2 + $0x10] sm:$0xff]
  %v317 = vld [vmem:[#allocation2 + $0x18] sm:$0xff]
  %v318 = vsel %vm302, 1, 0
  %v319 = vsel %vm303, 1, 0
  %v320 = vsel %vm304, 1, 0
  %v321 = vsel %vm305, 1, 0
  %vm322 = vcmp.eq.s32.totalorder %v318, 1
  %vm323 = vcmp.eq.s32.totalorder %v319, 1
  %vm324 = vcmp.eq.s32.totalorder %v320, 1
  %vm325 = vcmp.eq.s32.totalorder %v321, 1
  %v326 = vsel %vm322, 0.0, %v314
  %v327 = vsel %vm323, 0.0, %v315
  %v328 = vsel %vm324, 0.0, %v316
  %v329 = vsel %vm325, 0.0, %v317
  %v330 = vld [vmem:[#allocation2 + $0x2] sm:$0xff]
  %v331 = vld [vmem:[#allocation2 + $0xa] sm:$0xff]
  %v332 = vld [vmem:[#allocation2 + $0x12] sm:$0xff]
  %v333 = vld [vmem:[#allocation2 + $0x1a] sm:$0xff]
  %v334 = vsel %vm306, 1, 0
  %v335 = vsel %vm307, 1, 0
  %v336 = vsel %vm308, 1, 0
  %v337 = vsel %vm309, 1, 0
  %vm338 = vcmp.eq.s32.totalorder %v334, 1
  %vm339 = vcmp.eq.s32.totalorder %v335, 1
  %vm340 = vcmp.eq.s32.totalorder %v336, 1
  %vm341 = vcmp.eq.s32.totalorder %v337, 1
  %v342 = vsel %vm338, 0.0, %v330
  %v343 = vsel %vm339, 0.0, %v331
  %v344 = vsel %vm340, 0.0, %v332
  %v345 = vsel %vm341, 0.0, %v333
  %v346 = vld [vmem:[%s4] sm:$0xff]
  %v347 = vld [vmem:[%s4 + $0x8] sm:$0xff]
  %v348 = vld [vmem:[%s4 + $0x10] sm:$0xff]
  %v349 = vld [vmem:[%s4 + $0x18] sm:$0xff]
  %v350 = vld [vmem:[%s4 + $0x20] sm:$0xff]
  %v351 = vld [vmem:[%s4 + $0x28] sm:$0xff]
  %v352 = vld [vmem:[%s4 + $0x30] sm:$0xff]
  %v353 = vld [vmem:[%s4 + $0x38] sm:$0xff]
  %v354 = vld [vmem:[%s4 + $0x40] sm:$0xff]
  %v355 = vld [vmem:[%s4 + $0x48] sm:$0xff]
  %v356 = vld [vmem:[%s4 + $0x50] sm:$0xff]
  %v357 = vld [vmem:[%s4 + $0x58] sm:$0xff]
  %v358 = vld [vmem:[%s4 + $0x60] sm:$0xff]
  %v359 = vld [vmem:[%s4 + $0x68] sm:$0xff]
  %v360 = vld [vmem:[%s4 + $0x70] sm:$0xff]
  %v361 = vld [vmem:[%s4 + $0x78] sm:$0xff]
  %v362 = vld [vmem:[%s4 + $0x80] sm:$0xff]
  %v363 = vld [vmem:[%s4 + $0x88] sm:$0xff]
  %v364 = vld [vmem:[%s4 + $0x90] sm:$0xff]
  %v365 = vld [vmem:[%s4 + $0x98] sm:$0xff]
  %v366 = vld [vmem:[%s4 + $0xa0] sm:$0xff]
  %v367 = vld [vmem:[%s4 + $0xa8] sm:$0xff]
  %v368 = vld [vmem:[%s4 + $0xb0] sm:$0xff]
  %v369 = vld [vmem:[%s4 + $0xb8] sm:$0xff]
  %v370 = vld [vmem:[%s4 + $0xc0] sm:$0xff]
  %v371 = vld [vmem:[%s4 + $0xc8] sm:$0xff]
  %v372 = vld [vmem:[%s4 + $0xd0] sm:$0xff]
  %v373 = vld [vmem:[%s4 + $0xd8] sm:$0xff]
  %v374 = vld [vmem:[%s4 + $0xe0] sm:$0xff]
  %v375 = vld [vmem:[%s4 + $0xe8] sm:$0xff]
  %v376 = vld [vmem:[%s4 + $0xf0] sm:$0xff]
  %v377 = vld [vmem:[%s4 + $0xf8] sm:$0xff]
  %v378 = vld [vmem:[%s4 + $0x100] sm:$0xff]
  %v379 = vld [vmem:[%s4 + $0x108] sm:$0xff]
  %v380 = vld [vmem:[%s4 + $0x110] sm:$0xff]
  %v381 = vld [vmem:[%s4 + $0x118] sm:$0xff]
  %v382 = vld [vmem:[%s4 + $0x120] sm:$0xff]
  %v383 = vld [vmem:[%s4 + $0x128] sm:$0xff]
  %v384 = vld [vmem:[%s4 + $0x130] sm:$0xff]
  %v385 = vld [vmem:[%s4 + $0x138] sm:$0xff]
  %v386 = vld [vmem:[%s4 + $0x140] sm:$0xff]
  %v387 = vld [vmem:[%s4 + $0x148] sm:$0xff]
  %v388 = vld [vmem:[%s4 + $0x150] sm:$0xff]
  %v389 = vld [vmem:[%s4 + $0x158] sm:$0xff]
  %v390 = vld [vmem:[%s4 + $0x160] sm:$0xff]
  %v391 = vld [vmem:[%s4 + $0x168] sm:$0xff]
  %v392 = vld [vmem:[%s4 + $0x170] sm:$0xff]
  %v393 = vld [vmem:[%s4 + $0x178] sm:$0xff]
  %v394 = vld [vmem:[%s5] sm:$0x1]
  %v396 = vlaneseq
  %v397 = vshrl.u32 %v396, 7
  %v398 = vsub.s32 0, %v397
  %v399 = vrot.slane %v394, %v398
  %401 = vmatprep.subr.mxu0 0.0
  %402 = vmatpush1.msra.mxu0 %v346
  %403 = vmatprep.subr.mxu0 0.0
  %404 = vmatpush1.msra.mxu0 %v347
  %405 = vmatprep.subr.mxu0 0.0
  %406 = vmatpush1.msra.mxu0 %v348
  %407 = vmatprep.subr.mxu0 0.0
  %408 = vmatpush1.msra.mxu0 %v349
  %409 = vmatprep.subr.mxu0 0.0
  %410 = vmatpush1.msra.mxu0 %v350
  %411 = vmatprep.subr.mxu0 0.0
  %412 = vmatpush1.msra.mxu0 %v351
  %413 = vmatprep.subr.mxu0 0.0
  %414 = vmatpush1.msra.mxu0 %v352
  %415 = vmatprep.subr.mxu0 0.0
  %416 = vmatpush1.msra.mxu0 %v353
  %417 = vmatprep.subr.mxu0 0.0
  %418 = vmatpush1.msra.mxu0 %v354
  %419 = vmatprep.subr.mxu0 0.0
  %420 = vmatpush1.msra.mxu0 %v355
  %421 = vmatprep.subr.mxu0 0.0
  %422 = vmatpush1.msra.mxu0 %v356
  %423 = vmatprep.subr.mxu0 0.0
  %424 = vmatpush1.msra.mxu0 %v357
  %425 = vmatprep.subr.mxu0 0.0
  %426 = vmatpush1.msra.mxu0 %v358
  %427 = vmatprep.subr.mxu0 0.0
  %428 = vmatpush1.msra.mxu0 %v359
  %429 = vmatprep.subr.mxu0 0.0
  %430 = vmatpush1.msra.mxu0 %v360
  %431 = vmatprep.subr.mxu0 0.0
  %432 = vmatpush1.msra.mxu0 %v361
  %433 = vmatprep.subr.mxu0 0.0
  %434 = vmatpush1.msra.mxu0 %v362
  %435 = vmatprep.subr.mxu0 0.0
  %436 = vmatpush1.msra.mxu0 %v363
  %437 = vmatprep.subr.mxu0 0.0
  %438 = vmatpush1.msra.mxu0 %v364
  %439 = vmatprep.subr.mxu0 0.0
  %440 = vmatpush1.msra.mxu0 %v365
  %441 = vmatprep.subr.mxu0 0.0
  %442 = vmatpush1.msra.mxu0 %v366
  %443 = vmatprep.subr.mxu0 0.0
  %444 = vmatpush1.msra.mxu0 %v367
  %445 = vmatprep.subr.mxu0 0.0
  %446 = vmatpush1.msra.mxu0 %v368
  %447 = vmatprep.subr.mxu0 0.0
  %448 = vmatpush1.msra.mxu0 %v369
  %449 = vmatprep.subr.mxu0 0.0
  %450 = vmatpush1.msra.mxu0 %v370
  %451 = vmatprep.subr.mxu0 0.0
  %452 = vmatpush1.msra.mxu0 %v371
  %453 = vmatprep.subr.mxu0 0.0
  %454 = vmatpush1.msra.mxu0 %v372
  %455 = vmatprep.subr.mxu0 0.0
  %456 = vmatpush1.msra.mxu0 %v373
  %457 = vmatprep.subr.mxu0 0.0
  %458 = vmatpush1.msra.mxu0 %v374
  %459 = vmatprep.subr.mxu0 0.0
  %460 = vmatpush1.msra.mxu0 %v375
  %461 = vmatprep.subr.mxu0 0.0
  %462 = vmatpush1.msra.mxu0 %v376
  %463 = vmatprep.subr.mxu0 0.0
  %464 = vmatpush1.msra.mxu0 %v377
  %465 = vmatprep.mubr.f32.mxu0 %v310
  %466 = vmatmul.mubr.f32.gmra.mrb[0].mxu0 %v326
  %v467 = vpop.f32.mrb[0].mxu0
  %v468 = vadd.f32 %v399, %v467
  %v469 = vpop.f32.mrb[0].mxu0
  %470 = vmatprep.mubr.f32.mxu0 %v311
  %471 = vmatmul.mubr.f32.gmra.mrb[0].mxu0 %v327
  %v472 = vpop.f32.mrb[0].mxu0
  %v473 = vadd.f32 %v399, %v472
  %v474 = vpop.f32.mrb[0].mxu0
  %475 = vmatprep.mubr.f32.mxu0 %v312
  %476 = vmatmul.mubr.f32.gmra.mrb[0].mxu0 %v328
  %v477 = vpop.f32.mrb[0].mxu0
  %v478 = vadd.f32 %v399, %v477
  %v479 = vpop.f32.mrb[0].mxu0
  %480 = vmatprep.mubr.f32.mxu0 %v313
  %481 = vmatmul.mubr.f32.gmra.mrb[0].mxu0 %v329
  %v482 = vpop.f32.mrb[0].mxu0
  %v483 = vadd.f32 %v399, %v482
  %v484 = vpop.f32.mrb[0].mxu0
  %485 = vdwg.mxu0
  %486 = vmatprep.subr.mxu0 0.0
  %487 = vmatpush1.msra.mxu0 %v378
  %488 = vmatprep.subr.mxu0 0.0
  %489 = vmatpush1.msra.mxu0 %v379
  %490 = vmatprep.subr.mxu0 0.0
  %491 = vmatpush1.msra.mxu0 %v380
  %492 = vmatprep.subr.mxu0 0.0
  %493 = vmatpush1.msra.mxu0 %v381
  %494 = vmatprep.subr.mxu0 0.0
  %495 = vmatpush1.msra.mxu0 %v382
  %496 = vmatprep.subr.mxu0 0.0
  %497 = vmatpush1.msra.mxu0 %v383
  %498 = vmatprep.subr.mxu0 0.0
  %499 = vmatpush1.msra.mxu0 %v384
  %500 = vmatprep.subr.mxu0 0.0
  %501 = vmatpush1.msra.mxu0 %v385
  %502 = vmatprep.subr.mxu0 0.0
  %503 = vmatpush1.msra.mxu0 %v386
  %504 = vmatprep.subr.mxu0 0.0
  %505 = vmatpush1.msra.mxu0 %v387
  %506 = vmatprep.subr.mxu0 0.0
  %507 = vmatpush1.msra.mxu0 %v388
  %508 = vmatprep.subr.mxu0 0.0
  %509 = vmatpush1.msra.mxu0 %v389
  %510 = vmatprep.subr.mxu0 0.0
  %511 = vmatpush1.msra.mxu0 %v390
  %512 = vmatprep.subr.mxu0 0.0
  %513 = vmatpush1.msra.mxu0 %v391
  %514 = vmatprep.subr.mxu0 0.0
  %515 = vmatpush1.msra.mxu0 %v392
  %516 = vmatprep.subr.mxu0 0.0
  %517 = vmatpush1.msra.mxu0 %v393
  %518 = vmatprep.subr.mxu0 0.0
  %519 = vmatpush1.msra.mxu0 0.0
  %520 = vmatprep.subr.mxu0 0.0
  %521 = vmatpush1.msra.mxu0 0.0
  %522 = vmatprep.subr.mxu0 0.0
  %523 = vmatpush1.msra.mxu0 0.0
  %524 = vmatprep.subr.mxu0 0.0
  %525 = vmatpush1.msra.mxu0 0.0
  %526 = vmatprep.subr.mxu0 0.0
  %527 = vmatpush1.msra.mxu0 0.0
  %528 = vmatprep.subr.mxu0 0.0
  %529 = vmatpush1.msra.mxu0 0.0
  %530 = vmatprep.subr.mxu0 0.0
  %531 = vmatpush1.msra.mxu0 0.0
  %532 = vmatprep.subr.mxu0 0.0
  %533 = vmatpush1.msra.mxu0 0.0
  %534 = vmatprep.subr.mxu0 0.0
  %535 = vmatpush1.msra.mxu0 0.0
  %536 = vmatprep.subr.mxu0 0.0
  %537 = vmatpush1.msra.mxu0 0.0
  %538 = vmatprep.subr.mxu0 0.0
  %539 = vmatpush1.msra.mxu0 0.0
  %540 = vmatprep.subr.mxu0 0.0
  %541 = vmatpush1.msra.mxu0 0.0
  %542 = vmatprep.subr.mxu0 0.0
  %543 = vmatpush1.msra.mxu0 0.0
  %544 = vmatprep.subr.mxu0 0.0
  %545 = vmatpush1.msra.mxu0 0.0
  %546 = vmatprep.subr.mxu0 0.0
  %547 = vmatpush1.msra.mxu0 0.0
  %548 = vmatprep.subr.mxu0 0.0
  %549 = vmatpush1.msra.mxu0 0.0
  %550 = vmatprep.mubr.f32.mxu0 0.0
  %551 = vmatmul.mubr.f32.gmra.mrb[0].mxu0 %v342
  %v552 = vpop.f32.mrb[0].mxu0
  %v553 = vadd.f32 %v468, %v552
  %v554 = vpop.f32.mrb[0].mxu0
  %555 = vmatprep.mubr.f32.mxu0 0.0
  %556 = vmatmul.mubr.f32.gmra.mrb[0].mxu0 %v343
  %v557 = vpop.f32.mrb[0].mxu0
  %v558 = vadd.f32 %v473, %v557
  %v559 = vpop.f32.mrb[0].mxu0
  %560 = vmatprep.mubr.f32.mxu0 0.0
  %561 = vmatmul.mubr.f32.gmra.mrb[0].mxu0 %v344
  %v562 = vpop.f32.mrb[0].mxu0
  %v563 = vadd.f32 %v478, %v562
  %v564 = vpop.f32.mrb[0].mxu0
  %565 = vmatprep.mubr.f32.mxu0 0.0
  %566 = vmatmul.mubr.f32.gmra.mrb[0].mxu0 %v345
  %v567 = vpop.f32.mrb[0].mxu0
  %v568 = vadd.f32 %v483, %v567
  %v569 = vpop.f32.mrb[0].mxu0
  %570 = vdwg.mxu0
  %v571 = vmax.f32 %v553, 0.0
  %v572 = vmax.f32 %v558, 0.0
  %v573 = vmax.f32 %v563, 0.0
  %v574 = vmax.f32 %v568, 0.0
  %575 = vst [vmem:[#allocation3 + $0x1] sm:$0xff] %v571
  %576 = vst [vmem:[#allocation3 + $0x9] sm:$0xff] %v572
  %577 = vst [vmem:[#allocation3 + $0x11] sm:$0xff] %v573
  %578 = vst [vmem:[#allocation3 + $0x19] sm:$0xff] %v574
  %v579 = vld [vmem:[#allocation3] sm:$0xff]
  %v580 = vld [vmem:[#allocation3 + $0x8] sm:$0xff]
  %v581 = vld [vmem:[#allocation3 + $0x10] sm:$0xff]
  %v582 = vld [vmem:[#allocation3 + $0x18] sm:$0xff]
  %v583 = vsel %vm322, 0.0, %v579
  %v584 = vsel %vm323, 0.0, %v580
  %v585 = vsel %vm324, 0.0, %v581
  %v586 = vsel %vm325, 0.0, %v582
  %v587 = vld [vmem:[#allocation3 + $0x2] sm:$0xff]
  %v588 = vld [vmem:[#allocation3 + $0xa] sm:$0xff]
  %v589 = vld [vmem:[#allocation3 + $0x12] sm:$0xff]
  %v590 = vld [vmem:[#allocation3 + $0x1a] sm:$0xff]
  %v591 = vsel %vm338, 0.0, %v587
  %v592 = vsel %vm339, 0.0, %v588
  %v593 = vsel %vm340, 0.0, %v589
  %v594 = vsel %vm341, 0.0, %v590
  %v595 = vld [vmem:[%s6] sm:$0xff]
  %v596 = vld [vmem:[%s6 + $0x8] sm:$0xff]
  %v597 = vld [vmem:[%s6 + $0x10] sm:$0xff]
  %v598 = vld [vmem:[%s6 + $0x18] sm:$0xff]
  %v599 = vld [vmem:[%s6 + $0x20] sm:$0xff]
  %v600 = vld [vmem:[%s6 + $0x28] sm:$0xff]
  %v601 = vld [vmem:[%s6 + $0x30] sm:$0xff]
  %v602 = vld [vmem:[%s6 + $0x38] sm:$0xff]
  %v603 = vld [vmem:[%s6 + $0x40] sm:$0xff]
  %v604 = vld [vmem:[%s6 + $0x48] sm:$0xff]
  %v605 = vld [vmem:[%s6 + $0x50] sm:$0xff]
  %v606 = vld [vmem:[%s6 + $0x58] sm:$0xff]
  %v607 = vld [vmem:[%s6 + $0x60] sm:$0xff]
  %v608 = vld [vmem:[%s6 + $0x68] sm:$0xff]
  %v609 = vld [vmem:[%s6 + $0x70] sm:$0xff]
  %v610 = vld [vmem:[%s6 + $0x78] sm:$0xff]
  %v611 = vld [vmem:[%s6 + $0x80] sm:$0xff]
  %v612 = vld [vmem:[%s6 + $0x88] sm:$0xff]
  %v613 = vld [vmem:[%s6 + $0x90] sm:$0xff]
  %v614 = vld [vmem:[%s6 + $0x98] sm:$0xff]
  %v615 = vld [vmem:[%s6 + $0xa0] sm:$0xff]
  %v616 = vld [vmem:[%s6 + $0xa8] sm:$0xff]
  %v617 = vld [vmem:[%s6 + $0xb0] sm:$0xff]
  %v618 = vld [vmem:[%s6 + $0xb8] sm:$0xff]
  %v619 = vld [vmem:[%s6 + $0xc0] sm:$0xff]
  %v620 = vld [vmem:[%s6 + $0xc8] sm:$0xff]
  %v621 = vld [vmem:[%s6 + $0xd0] sm:$0xff]
  %v622 = vld [vmem:[%s6 + $0xd8] sm:$0xff]
  %v623 = vld [vmem:[%s6 + $0xe0] sm:$0xff]
  %v624 = vld [vmem:[%s6 + $0xe8] sm:$0xff]
  %v625 = vld [vmem:[%s6 + $0xf0] sm:$0xff]
  %v626 = vld [vmem:[%s6 + $0xf8] sm:$0xff]
  %v627 = vld [vmem:[%s6 + $0x100] sm:$0xff]
  %v628 = vld [vmem:[%s6 + $0x108] sm:$0xff]
  %v629 = vld [vmem:[%s6 + $0x110] sm:$0xff]
  %v630 = vld [vmem:[%s6 + $0x118] sm:$0xff]
  %v631 = vld [vmem:[%s6 + $0x120] sm:$0xff]
  %v632 = vld [vmem:[%s6 + $0x128] sm:$0xff]
  %v633 = vld [vmem:[%s6 + $0x130] sm:$0xff]
  %v634 = vld [vmem:[%s6 + $0x138] sm:$0xff]
  %v635 = vld [vmem:[%s6 + $0x140] sm:$0xff]
  %v636 = vld [vmem:[%s6 + $0x148] sm:$0xff]
  %v637 = vld [vmem:[%s6 + $0x150] sm:$0xff]
  %v638 = vld [vmem:[%s6 + $0x158] sm:$0xff]
  %v639 = vld [vmem:[%s6 + $0x160] sm:$0xff]
  %v640 = vld [vmem:[%s6 + $0x168] sm:$0xff]
  %v641 = vld [vmem:[%s6 + $0x170] sm:$0xff]
  %v642 = vld [vmem:[%s6 + $0x178] sm:$0xff]
  %v643 = vld [vmem:[%s7] sm:$0x1]
  %v645 = vlaneseq
  %v646 = vshrl.u32 %v645, 7
  %v647 = vsub.s32 0, %v646
  %v648 = vrot.slane %v643, %v647
  %650 = vmatprep.subr.mxu0 0.0
  %651 = vmatpush1.msra.mxu0 %v595
  %652 = vmatprep.subr.mxu0 0.0
  %653 = vmatpush1.msra.mxu0 %v596
  %654 = vmatprep.subr.mxu0 0.0
  %655 = vmatpush1.msra.mxu0 %v597
  %656 = vmatprep.subr.mxu0 0.0
  %657 = vmatpush1.msra.mxu0 %v598
  %658 = vmatprep.subr.mxu0 0.0
  %659 = vmatpush1.msra.mxu0 %v599
  %660 = vmatprep.subr.mxu0 0.0
  %661 = vmatpush1.msra.mxu0 %v600
  %662 = vmatprep.subr.mxu0 0.0
  %663 = vmatpush1.msra.mxu0 %v601
  %664 = vmatprep.subr.mxu0 0.0
  %665 = vmatpush1.msra.mxu0 %v602
  %666 = vmatprep.subr.mxu0 0.0
  %667 = vmatpush1.msra.mxu0 %v603
  %668 = vmatprep.subr.mxu0 0.0
  %669 = vmatpush1.msra.mxu0 %v604
  %670 = vmatprep.subr.mxu0 0.0
  %671 = vmatpush1.msra.mxu0 %v605
  %672 = vmatprep.subr.mxu0 0.0
  %673 = vmatpush1.msra.mxu0 %v606
  %674 = vmatprep.subr.mxu0 0.0
  %675 = vmatpush1.msra.mxu0 %v607
  %676 = vmatprep.subr.mxu0 0.0
  %677 = vmatpush1.msra.mxu0 %v608
  %678 = vmatprep.subr.mxu0 0.0
  %679 = vmatpush1.msra.mxu0 %v609
  %680 = vmatprep.subr.mxu0 0.0
  %681 = vmatpush1.msra.mxu0 %v610
  %682 = vmatprep.subr.mxu0 0.0
  %683 = vmatpush1.msra.mxu0 %v611
  %684 = vmatprep.subr.mxu0 0.0
  %685 = vmatpush1.msra.mxu0 %v612
  %686 = vmatprep.subr.mxu0 0.0
  %687 = vmatpush1.msra.mxu0 %v613
  %688 = vmatprep.subr.mxu0 0.0
  %689 = vmatpush1.msra.mxu0 %v614
  %690 = vmatprep.subr.mxu0 0.0
  %691 = vmatpush1.msra.mxu0 %v615
  %692 = vmatprep.subr.mxu0 0.0
  %693 = vmatpush1.msra.mxu0 %v616
  %694 = vmatprep.subr.mxu0 0.0
  %695 = vmatpush1.msra.mxu0 %v617
  %696 = vmatprep.subr.mxu0 0.0
  %697 = vmatpush1.msra.mxu0 %v618
  %698 = vmatprep.subr.mxu0 0.0
  %699 = vmatpush1.msra.mxu0 %v619
  %700 = vmatprep.subr.mxu0 0.0
  %701 = vmatpush1.msra.mxu0 %v620
  %702 = vmatprep.subr.mxu0 0.0
  %703 = vmatpush1.msra.mxu0 %v621
  %704 = vmatprep.subr.mxu0 0.0
  %705 = vmatpush1.msra.mxu0 %v622
  %706 = vmatprep.subr.mxu0 0.0
  %707 = vmatpush1.msra.mxu0 %v623
  %708 = vmatprep.subr.mxu0 0.0
  %709 = vmatpush1.msra.mxu0 %v624
  %710 = vmatprep.subr.mxu0 0.0
  %711 = vmatpush1.msra.mxu0 %v625
  %712 = vmatprep.subr.mxu0 0.0
  %713 = vmatpush1.msra.mxu0 %v626
  %714 = vmatprep.mubr.f32.mxu0 %v571
  %715 = vmatmul.mubr.f32.gmra.mrb[0].mxu0 %v583
  %v716 = vpop.f32.mrb[0].mxu0
  %v717 = vadd.f32 %v648, %v716
  %v718 = vpop.f32.mrb[0].mxu0
  %719 = vmatprep.mubr.f32.mxu0 %v572
  %720 = vmatmul.mubr.f32.gmra.mrb[0].mxu0 %v584
  %v721 = vpop.f32.mrb[0].mxu0
  %v722 = vadd.f32 %v648, %v721
  %v723 = vpop.f32.mrb[0].mxu0
  %724 = vmatprep.mubr.f32.mxu0 %v573
  %725 = vmatmul.mubr.f32.gmra.mrb[0].mxu0 %v585
  %v726 = vpop.f32.mrb[0].mxu0
  %v727 = vadd.f32 %v648, %v726
  %v728 = vpop.f32.mrb[0].mxu0
  %729 = vmatprep.mubr.f32.mxu0 %v574
  %730 = vmatmul.mubr.f32.gmra.mrb[0].mxu0 %v586
  %v731 = vpop.f32.mrb[0].mxu0
  %v732 = vadd.f32 %v648, %v731
  %v733 = vpop.f32.mrb[0].mxu0
  %734 = vdwg.mxu0
  %735 = vmatprep.subr.mxu0 0.0
  %736 = vmatpush1.msra.mxu0 %v627
  %737 = vmatprep.subr.mxu0 0.0
  %738 = vmatpush1.msra.mxu0 %v628
  %739 = vmatprep.subr.mxu0 0.0
  %740 = vmatpush1.msra.mxu0 %v629
  %741 = vmatprep.subr.mxu0 0.0
  %742 = vmatpush1.msra.mxu0 %v630
  %743 = vmatprep.subr.mxu0 0.0
  %744 = vmatpush1.msra.mxu0 %v631
  %745 = vmatprep.subr.mxu0 0.0
  %746 = vmatpush1.msra.mxu0 %v632
  %747 = vmatprep.subr.mxu0 0.0
  %748 = vmatpush1.msra.mxu0 %v633
  %749 = vmatprep.subr.mxu0 0.0
  %750 = vmatpush1.msra.mxu0 %v634
  %751 = vmatprep.subr.mxu0 0.0
  %752 = vmatpush1.msra.mxu0 %v635
  %753 = vmatprep.subr.mxu0 0.0
  %754 = vmatpush1.msra.mxu0 %v636
  %755 = vmatprep.subr.mxu0 0.0
  %756 = vmatpush1.msra.mxu0 %v637
  %757 = vmatprep.subr.mxu0 0.0
  %758 = vmatpush1.msra.mxu0 %v638
  %759 = vmatprep.subr.mxu0 0.0
  %760 = vmatpush1.msra.mxu0 %v639
  %761 = vmatprep.subr.mxu0 0.0
  %762 = vmatpush1.msra.mxu0 %v640
  %763 = vmatprep.subr.mxu0 0.0
  %764 = vmatpush1.msra.mxu0 %v641
  %765 = vmatprep.subr.mxu0 0.0
  %766 = vmatpush1.msra.mxu0 %v642
  %767 = vmatprep.subr.mxu0 0.0
  %768 = vmatpush1.msra.mxu0 0.0
  %769 = vmatprep.subr.mxu0 0.0
  %770 = vmatpush1.msra.mxu0 0.0
  %771 = vmatprep.subr.mxu0 0.0
  %772 = vmatpush1.msra.mxu0 0.0
  %773 = vmatprep.subr.mxu0 0.0
  %774 = vmatpush1.msra.mxu0 0.0
  %775 = vmatprep.subr.mxu0 0.0
  %776 = vmatpush1.msra.mxu0 0.0
  %777 = vmatprep.subr.mxu0 0.0
  %778 = vmatpush1.msra.mxu0 0.0
  %779 = vmatprep.subr.mxu0 0.0
  %780 = vmatpush1.msra.mxu0 0.0
  %781 = vmatprep.subr.mxu0 0.0
  %782 = vmatpush1.msra.mxu0 0.0
  %783 = vmatprep.subr.mxu0 0.0
  %784 = vmatpush1.msra.mxu0 0.0
  %785 = vmatprep.subr.mxu0 0.0
  %786 = vmatpush1.msra.mxu0 0.0
  %787 = vmatprep.subr.mxu0 0.0
  %788 = vmatpush1.msra.mxu0 0.0
  %789 = vmatprep.subr.mxu0 0.0
  %790 = vmatpush1.msra.mxu0 0.0
  %791 = vmatprep.subr.mxu0 0.0
  %792 = vmatpush1.msra.mxu0 0.0
  %793 = vmatprep.subr.mxu0 0.0
  %794 = vmatpush1.msra.mxu0 0.0
  %795 = vmatprep.subr.mxu0 0.0
  %796 = vmatpush1.msra.mxu0 0.0
  %797 = vmatprep.subr.mxu0 0.0
  %798 = vmatpush1.msra.mxu0 0.0
  %799 = vmatprep.mubr.f32.mxu0 0.0
  %800 = vmatmul.mubr.f32.gmra.mrb[0].mxu0 %v591
  %v801 = vpop.f32.mrb[0].mxu0
  %v802 = vadd.f32 %v717, %v801
  %v803 = vpop.f32.mrb[0].mxu0
  %804 = vmatprep.mubr.f32.mxu0 0.0
  %805 = vmatmul.mubr.f32.gmra.mrb[0].mxu0 %v592
  %v806 = vpop.f32.mrb[0].mxu0
  %v807 = vadd.f32 %v722, %v806
  %v808 = vpop.f32.mrb[0].mxu0
  %809 = vmatprep.mubr.f32.mxu0 0.0
  %810 = vmatmul.mubr.f32.gmra.mrb[0].mxu0 %v593
  %v811 = vpop.f32.mrb[0].mxu0
  %v812 = vadd.f32 %v727, %v811
  %v813 = vpop.f32.mrb[0].mxu0
  %814 = vmatprep.mubr.f32.mxu0 0.0
  %815 = vmatmul.mubr.f32.gmra.mrb[0].mxu0 %v594
  %v816 = vpop.f32.mrb[0].mxu0
  %v817 = vadd.f32 %v732, %v816
  %v818 = vpop.f32.mrb[0].mxu0
  %819 = vdwg.mxu0
  %v820 = vmax.f32 %v802, 0.0
  %v821 = vmax.f32 %v807, 0.0
  %v822 = vmax.f32 %v812, 0.0
  %v823 = vmax.f32 %v817, 0.0
  %824 = vst [vmem:[%s8] sm:$0xff] %v820
  %825 = vst [vmem:[%s8 + $0x8] sm:$0xff] %v821
  %826 = vst [vmem:[%s8 + $0x10] sm:$0xff] %v822
  %827 = vst [vmem:[%s8 + $0x18] sm:$0xff] %v823
  // Predicated region
  $region34: #{upsample_block_forward.1} parent=0 // pred_check
    _
  $region35: #{upsample_block_forward.1} parent=0 // pred_check_branch
    %829 = sbr.rel (0) target = $region37
  $region36: #{upsample_block_forward.1} parent=0 // pred_region
    _
  $region37: #{upsample_block_forward.1} parent=0 // pred_fallthru
    _
  // Predicated region
  $region38: #{upsample_block_forward.1} parent=0 // pred_check
    _
  $region39: #{upsample_block_forward.1} parent=0 // pred_check_branch
    %831 = sbr.rel (0) target = $region41
  $region40: #{upsample_block_forward.1} parent=0 // pred_region
    _
  $region41: #{upsample_block_forward.1} parent=0 // pred_fallthru
    _

</llo_original>
